<compile_context>
chip_gen: v7x
topology: tpu7x:2x2x1
jax: 0.10.0
libtpu: 0.0.40
codegen_flags: <defaults>
</compile_context>

<pallas_src>
import functools

import jax
import jax.numpy as jnp
from jax.experimental import pallas as pl
from jax.experimental.pallas import tpu as pltpu


def _round_up(v, m):
    return ((v + m - 1) // m) * m


def _lora_qkv_kernel(x_ref, wqkv_ref, bias_ref, aqv_ref, bqv_ref, o_ref):
    # cast activations to the compute dtype inside the kernel (free vs MXU work)
    x = x_ref[...].astype(wqkv_ref.dtype)                        # (tm, C)

    # base qkv projection (MXU, f32 accumulation) + bias
    qkv = jnp.dot(x, wqkv_ref[...],
                  preferred_element_type=jnp.float32) + bias_ref[...]   # (tm, 3C) f32

    # fused LoRA branch:  (x @ [A_q^T | A_v^T]) @ [B_q^T | 0 | B_v^T]_blockdiag
    #   -> columns [:C] = new_q, [C:2C] = 0, [2C:] = new_v
    xa = jnp.dot(x, aqv_ref[...], preferred_element_type=jnp.float32)   # (tm, 2r) f32
    lora = jnp.dot(xa.astype(bqv_ref.dtype), bqv_ref[...],
                   preferred_element_type=jnp.float32)                  # (tm, 3C) f32

    # single full-width lane-dense store
    o_ref[...] = (qkv + lora).astype(o_ref.dtype)


def lora_qkv(x, w_qkv, b_qkv, a_q, b_q, a_v, b_v, *,
             tm=1024, compute_dtype=jnp.bfloat16):
    """x: (B, H, W, C).  Weights follow PyTorch nn.Linear convention
    (out_features, in_features); bias is (out_features,)."""
    B, H, W, C = x.shape
    r = a_q.shape[0]
    out_dim = 3 * C
    M = B * H * W

    w_isz = jnp.dtype(compute_dtype).itemsize
    x_isz = jnp.dtype(x.dtype).itemsize
    o_isz = jnp.dtype(x.dtype).itemsize

    # --- tile size selection -------------------------------------------------
    tm = max(8, min(tm, _round_up(M, 8)))        # don't tile larger than the data

    def _vmem_bytes(tm_):
        # double-buffered activation tiles (input + output)
        act = 2 * tm_ * C * x_isz + 2 * tm_ * out_dim * o_isz
        # weights / bias (constant block index; budget 2x to stay conservative)
        wts = 2 * (C * out_dim * w_isz            # W_qkv^T
                   + out_dim * 4                  # bias (f32)
                   + C * 2 * r * w_isz            # [A_q^T | A_v^T]
                   + 2 * r * out_dim * w_isz)     # [B_q^T | 0 | B_v^T]
        return act + wts

    # stay comfortably inside v7x's 64 MiB physical VMEM (also fine for v5e/v6e)
    budget = 44 * 1024 * 1024
    while tm > 8 and _vmem_bytes(tm) > budget:
        tm //= 2
    tm = max(8, (tm // 8) * 8)

    M_pad = _round_up(M, tm)

    # --- operand prep --------------------------------------------------------
    x2 = x.reshape(M, C)                                          # keep original dtype
    if M_pad != M:
        x2 = jnp.pad(x2, ((0, M_pad - M), (0, 0)))

    wqkv_t = w_qkv.T.astype(compute_dtype)                        # (C, 3C)
    bias2 = b_qkv.astype(jnp.float32).reshape(1, out_dim)         # (1, 3C) f32
    aqv_t = jnp.concatenate([a_q.T, a_v.T], axis=1).astype(compute_dtype)   # (C, 2r)
    # LoRA "B" laid out at full output width: q columns, zero k columns, v columns.
    bqv_t = jnp.zeros((2 * r, out_dim), dtype=jnp.float32)
    bqv_t = bqv_t.at[:r, :C].set(b_q.T.astype(jnp.float32))
    bqv_t = bqv_t.at[r:, 2 * C:].set(b_v.T.astype(jnp.float32))
    bqv_t = bqv_t.astype(compute_dtype)                           # (2r, 3C)

    kernel = functools.partial(_lora_qkv_kernel)

    vmem_limit = int(min(max(_vmem_bytes(tm) + (8 << 20), 32 << 20), 56 << 20))

    out2 = pl.pallas_call(
        kernel,
        out_shape=jax.ShapeDtypeStruct((M_pad, out_dim), x.dtype),
        grid_spec=pltpu.PrefetchScalarGridSpec(
            num_scalar_prefetch=0,
            grid=(M_pad // tm,),
            in_specs=[
                pl.BlockSpec((tm, C), lambda i: (i, 0)),                 # x tile
                pl.BlockSpec((C, out_dim), lambda i: (0, 0)),            # W_qkv^T
                pl.BlockSpec((1, out_dim), lambda i: (0, 0)),            # bias
                pl.BlockSpec((C, 2 * r), lambda i: (0, 0)),              # [Aq^T|Av^T]
                pl.BlockSpec((2 * r, out_dim), lambda i: (0, 0)),        # [Bq^T|0|Bv^T]
            ],
            out_specs=pl.BlockSpec((tm, out_dim), lambda i: (i, 0)),
        ),
        compiler_params=pltpu.CompilerParams(
            dimension_semantics=("parallel",),
            vmem_limit_bytes=vmem_limit),
    )(x2, wqkv_t, bias2, aqv_t, bqv_t)

    return out2[:M].reshape(B, H, W, out_dim)


def lora_qkv_ref(x, w_qkv, b_qkv, a_q, b_q, a_v, b_v):
    """Pure-JAX reference matching the PyTorch forward (f32)."""
    qkv = jnp.einsum('bhwc,oc->bhwo', x, w_qkv) + b_qkv
    new_q = jnp.einsum('bhwr,or->bhwo', jnp.einsum('bhwc,rc->bhwr', x, a_q), b_q)
    new_v = jnp.einsum('bhwr,or->bhwo', jnp.einsum('bhwc,rc->bhwr', x, a_v), b_v)
    C = x.shape[-1]
    qkv = qkv.at[..., :C].add(new_q)
    qkv = qkv.at[..., -C:].add(new_v)
    return qkv


if __name__ == "__main__":
    # Small shapes consistent with the SAM image-encoder block:
    #   x: (B, H, W, C), qkv: Linear(C, 3C, bias=True), LoRA rank r
    B, H, W, C, r = 2, 8, 8, 32, 4

    key = jax.random.PRNGKey(0)
    keys = jax.random.split(key, 7)

    x = jax.random.normal(keys[0], (B, H, W, C), dtype=jnp.float32)

    # PyTorch nn.Linear convention: weight (out_features, in_features)
    w_qkv = jax.random.normal(keys[1], (3 * C, C), dtype=jnp.float32) * 0.05
    b_qkv = jax.random.normal(keys[2], (3 * C,), dtype=jnp.float32) * 0.05
    a_q = jax.random.normal(keys[3], (r, C), dtype=jnp.float32) * 0.05   # linear_a_q
    b_q = jax.random.normal(keys[4], (C, r), dtype=jnp.float32) * 0.05   # linear_b_q
    a_v = jax.random.normal(keys[5], (r, C), dtype=jnp.float32) * 0.05   # linear_a_v
    b_v = jax.random.normal(keys[6], (C, r), dtype=jnp.float32) * 0.05   # linear_b_v

    ref = lora_qkv_ref(x, w_qkv, b_qkv, a_q, b_q, a_v, b_v)

    # 1) f32 compute path: tight check against the reference
    out_f32 = lora_qkv(x, w_qkv, b_qkv, a_q, b_q, a_v, b_v,
                       compute_dtype=jnp.float32)
    out_f32 = jax.block_until_ready(out_f32)
    assert out_f32.shape == (B, H, W, 3 * C)
    assert jnp.allclose(out_f32, ref, atol=1e-4, rtol=1e-4), "f32 mismatch vs reference"

    # 2) default bf16-weights fast path (f32 accumulation) -> looser tolerance
    out_bf16 = lora_qkv(x, w_qkv, b_qkv, a_q, b_q, a_v, b_v)
    out_bf16 = jax.block_until_ready(out_bf16)
    assert out_bf16.shape == (B, H, W, 3 * C)
    assert jnp.allclose(out_bf16, ref, atol=2e-2, rtol=2e-2), "bf16 mismatch vs reference"

    # 3) non-divisible M (exercises the padding path), f32 for tight check
    x_odd = jax.random.normal(keys[0], (2, 7, 9, C), dtype=jnp.float32)
    out_odd = lora_qkv(x_odd, w_qkv, b_qkv, a_q, b_q, a_v, b_v,
                       compute_dtype=jnp.float32, tm=64)
    out_odd = jax.block_until_ready(out_odd)
    ref_odd = lora_qkv_ref(x_odd, w_qkv, b_qkv, a_q, b_q, a_v, b_v)
    assert jnp.allclose(out_odd, ref_odd, atol=1e-4, rtol=1e-4), "padded-M mismatch"

    print("KERNEL_OK")
</pallas_src>

<mosaic_0001>
module attributes {stable_mosaic.version = 11 : i64} {
  func.func @_lora_qkv_kernel(%arg0: i32, %arg1: memref<128x32xf32, #tpu.memory_space<vmem>>, %arg2: memref<32x96xf32, #tpu.memory_space<vmem>>, %arg3: memref<1x96xf32, #tpu.memory_space<vmem>>, %arg4: memref<32x8xf32, #tpu.memory_space<vmem>>, %arg5: memref<8x96xf32, #tpu.memory_space<vmem>>, %arg6: memref<128x96xf32, #tpu.memory_space<vmem>>) attributes {dimension_semantics = [#tpu.dimension_semantics<parallel>], iteration_bounds = array<i64: 1>, scalar_prefetch = 0 : i64, scratch_operands = 0 : i64, tpu.core_type = #tpu.core_type<tc>, window_params = [{transform_indices = @transform_0, window_bounds = array<i64: 128, 32>}, {pipeline_mode = #tpu.pipeline_mode<synchronous>, transform_indices = @transform_1, window_bounds = array<i64: 32, 96>}, {pipeline_mode = #tpu.pipeline_mode<synchronous>, transform_indices = @transform_2, window_bounds = array<i64: 1, 96>}, {pipeline_mode = #tpu.pipeline_mode<synchronous>, transform_indices = @transform_3, window_bounds = array<i64: 32, 8>}, {pipeline_mode = #tpu.pipeline_mode<synchronous>, transform_indices = @transform_4, window_bounds = array<i64: 8, 96>}, {transform_indices = @transform_5, window_bounds = array<i64: 128, 96>}]} {
    %c0 = arith.constant 0 : index
    %c0_0 = arith.constant 0 : index
    %0 = vector.load %arg1[%c0, %c0_0] : memref<128x32xf32, #tpu.memory_space<vmem>>, vector<128x32xf32>
    %c0_1 = arith.constant 0 : index
    %c0_2 = arith.constant 0 : index
    %1 = vector.load %arg2[%c0_1, %c0_2] : memref<32x96xf32, #tpu.memory_space<vmem>>, vector<32x96xf32>
    %cst = arith.constant dense<0.000000e+00> : vector<128x96xf32>
    %2 = tpu.matmul %0, %1, %cst {dimension_numbers = #tpu.dot_dimension_numbers<[1], [0], [0], [1], [0, 0, 1, 1], [], []>} : vector<128x32xf32>, vector<32x96xf32>, vector<128x96xf32> -> vector<128x96xf32>
    %c0_3 = arith.constant 0 : index
    %c0_4 = arith.constant 0 : index
    %3 = vector.load %arg3[%c0_3, %c0_4] : memref<1x96xf32, #tpu.memory_space<vmem>>, vector<1x96xf32>
    %4 = vector.broadcast %3 : vector<1x96xf32> to vector<128x96xf32>
    %5 = arith.addf %2, %4 : vector<128x96xf32>
    %c0_5 = arith.constant 0 : index
    %c0_6 = arith.constant 0 : index
    %6 = vector.load %arg4[%c0_5, %c0_6] : memref<32x8xf32, #tpu.memory_space<vmem>>, vector<32x8xf32>
    %cst_7 = arith.constant dense<0.000000e+00> : vector<128x8xf32>
    %7 = tpu.matmul %0, %6, %cst_7 {dimension_numbers = #tpu.dot_dimension_numbers<[1], [0], [0], [1], [0, 0, 1, 1], [], []>} : vector<128x32xf32>, vector<32x8xf32>, vector<128x8xf32> -> vector<128x8xf32>
    %c0_8 = arith.constant 0 : index
    %c0_9 = arith.constant 0 : index
    %8 = vector.load %arg5[%c0_8, %c0_9] : memref<8x96xf32, #tpu.memory_space<vmem>>, vector<8x96xf32>
    %cst_10 = arith.constant dense<0.000000e+00> : vector<128x96xf32>
    %9 = tpu.matmul %7, %8, %cst_10 {dimension_numbers = #tpu.dot_dimension_numbers<[1], [0], [0], [1], [0, 0, 1, 1], [], []>} : vector<128x8xf32>, vector<8x96xf32>, vector<128x96xf32> -> vector<128x96xf32>
    %10 = arith.addf %5, %9 : vector<128x96xf32>
    %c0_11 = arith.constant 0 : index
    %c0_12 = arith.constant 0 : index
    %11 = vector.load %arg6[%c0_11, %c0_12] : memref<128x96xf32, #tpu.memory_space<vmem>>, vector<128x96xf32>
    tpu.vector_store %arg6[%c0_11, %c0_12], %10 {strides = array<i32>} : memref<128x96xf32, #tpu.memory_space<vmem>>, vector<128x96xf32>,
    return
  }
  func.func @transform_0(%arg0: i32) -> (i32, i32) {
    %c0_i32 = arith.constant 0 : i32
    %c0_i32_0 = arith.constant 0 : i32
    return %arg0, %c0_i32 : i32, i32
  }
  func.func @transform_1(%arg0: i32) -> (i32, i32) {
    %c0_i32 = arith.constant 0 : i32
    %c0_i32_0 = arith.constant 0 : i32
    %c0_i32_1 = arith.constant 0 : i32
    return %c0_i32, %c0_i32_0 : i32, i32
  }
  func.func @transform_2(%arg0: i32) -> (i32, i32) {
    %c0_i32 = arith.constant 0 : i32
    %c0_i32_0 = arith.constant 0 : i32
    %c0_i32_1 = arith.constant 0 : i32
    return %c0_i32, %c0_i32_0 : i32, i32
  }
  func.func @transform_3(%arg0: i32) -> (i32, i32) {
    %c0_i32 = arith.constant 0 : i32
    %c0_i32_0 = arith.constant 0 : i32
    %c0_i32_1 = arith.constant 0 : i32
    return %c0_i32, %c0_i32_0 : i32, i32
  }
  func.func @transform_4(%arg0: i32) -> (i32, i32) {
    %c0_i32 = arith.constant 0 : i32
    %c0_i32_0 = arith.constant 0 : i32
    %c0_i32_1 = arith.constant 0 : i32
    return %c0_i32, %c0_i32_0 : i32, i32
  }
  func.func @transform_5(%arg0: i32) -> (i32, i32) {
    %c0_i32 = arith.constant 0 : i32
    %c0_i32_0 = arith.constant 0 : i32
    return %arg0, %c0_i32 : i32, i32
  }
}

</mosaic_0001>

<llo_original>
// kernel: tpu_custom_call.1
$region0: #{tpu_custom_call.1}
  #allocation0 [shape = 'u32[]', space=smem, size = 0x4, offset = 0x4, fixed_abs, tag = 'smem constant byte address 0x4 - core index']
  #allocation1 [shape = 'u32[144,128]{1,0:T(1,128)}', space=vmem, size = 0x12000, scoped, tag = 'internal scratch']
  %s0 = inlined_call_operand.vmem [shape: f32[128,32], index: 0, kind: input, shape index: {}]
  %s1 = inlined_call_operand.vmem [shape: f32[32,96], index: 1, kind: input, shape index: {}]
  %s2 = inlined_call_operand.vmem [shape: f32[1,96], index: 2, kind: input, shape index: {}]
  %s3 = inlined_call_operand.vmem [shape: f32[32,8], index: 3, kind: input, shape index: {}]
  %s4 = inlined_call_operand.vmem [shape: f32[8,96], index: 4, kind: input, shape index: {}]
  %s5 = inlined_call_operand.vmem [shape: f32[128,96], index: 5, kind: output, shape index: {}]
  %s6 = sld [smem:[#allocation0]]
  $region30: #{tpu_custom_call.1} parent=0
    _
  %s8 = ssub.s32 1, %s6
  %s9 = scalar_select 0, %s8, %s6
  // Predicated region
  $region2: #{tpu_custom_call.1} parent=0 // pred_check
    _
  $region3: #{tpu_custom_call.1} parent=0 // pred_check_branch
    %11 = sbr.rel (0) target = $region5
  $region4: #{tpu_custom_call.1} parent=0 // pred_region
    _
  $region5: #{tpu_custom_call.1} parent=0 // pred_fallthru
    _
  // Predicated region
  $region6: #{tpu_custom_call.1} parent=0 // pred_check
    _
  $region7: #{tpu_custom_call.1} parent=0 // pred_check_branch
    %13 = sbr.rel (0) target = $region9
  $region8: #{tpu_custom_call.1} parent=0 // pred_region
    _
  $region9: #{tpu_custom_call.1} parent=0 // pred_fallthru
    _
  // Predicated region
  $region10: #{tpu_custom_call.1} parent=0 // pred_check
    _
  $region11: #{tpu_custom_call.1} parent=0 // pred_check_branch
    %15 = sbr.rel (0) target = $region13
  $region12: #{tpu_custom_call.1} parent=0 // pred_region
    _
  $region13: #{tpu_custom_call.1} parent=0 // pred_fallthru
    _
  // Predicated region
  $region14: #{tpu_custom_call.1} parent=0 // pred_check
    _
  $region15: #{tpu_custom_call.1} parent=0 // pred_check_branch
    %17 = sbr.rel (0) target = $region17
  $region16: #{tpu_custom_call.1} parent=0 // pred_region
    _
  $region17: #{tpu_custom_call.1} parent=0 // pred_fallthru
    _
  // Predicated region
  $region18: #{tpu_custom_call.1} parent=0 // pred_check
    _
  $region19: #{tpu_custom_call.1} parent=0 // pred_check_branch
    %19 = sbr.rel (0) target = $region21
  $region20: #{tpu_custom_call.1} parent=0 // pred_region
    _
  $region21: #{tpu_custom_call.1} parent=0 // pred_fallthru
    _
  %v20 = vld [vmem:[%s0] sm:$0xff]
  %v21 = vld [vmem:[%s0 + $0x8] sm:$0xff]
  %v22 = vld [vmem:[%s0 + $0x10] sm:$0xff]
  %v23 = vld [vmem:[%s0 + $0x18] sm:$0xff]
  %v24 = vld [vmem:[%s0 + $0x20] sm:$0xff]
  %v25 = vld [vmem:[%s0 + $0x28] sm:$0xff]
  %v26 = vld [vmem:[%s0 + $0x30] sm:$0xff]
  %v27 = vld [vmem:[%s0 + $0x38] sm:$0xff]
  %v28 = vld [vmem:[%s0 + $0x40] sm:$0xff]
  %v29 = vld [vmem:[%s0 + $0x48] sm:$0xff]
  %v30 = vld [vmem:[%s0 + $0x50] sm:$0xff]
  %v31 = vld [vmem:[%s0 + $0x58] sm:$0xff]
  %v32 = vld [vmem:[%s0 + $0x60] sm:$0xff]
  %v33 = vld [vmem:[%s0 + $0x68] sm:$0xff]
  %v34 = vld [vmem:[%s0 + $0x70] sm:$0xff]
  %v35 = vld [vmem:[%s0 + $0x78] sm:$0xff]
  %v36 = vld [vmem:[%s1] sm:$0xff]
  %v37 = vld [vmem:[%s1 + $0x8] sm:$0xff]
  %v38 = vld [vmem:[%s1 + $0x10] sm:$0xff]
  %v39 = vld [vmem:[%s1 + $0x18] sm:$0xff]
  %v40 = vld [vmem:[%s2] sm:$0x1]
  %v42 = vlaneseq
  %v43 = vshrl.u32 %v42, 7
  %v44 = vsub.s32 0, %v43
  %v45 = vrot.slane %v40, %v44
  %vm47 = vcmask 261120
  %v49 = vsel %vm47, %v20, 0
  %v52 = vsel %vm47, %v21, 0
  %v55 = vsel %vm47, %v22, 0
  %v58 = vsel %vm47, %v23, 0
  %v61 = vsel %vm47, %v24, 0
  %v64 = vsel %vm47, %v25, 0
  %v67 = vsel %vm47, %v26, 0
  %v70 = vsel %vm47, %v27, 0
  %v73 = vsel %vm47, %v28, 0
  %v76 = vsel %vm47, %v29, 0
  %v79 = vsel %vm47, %v30, 0
  %v82 = vsel %vm47, %v31, 0
  %v85 = vsel %vm47, %v32, 0
  %v88 = vsel %vm47, %v33, 0
  %v91 = vsel %vm47, %v34, 0
  %v94 = vsel %vm47, %v35, 0
  %96 = vmatprep.subr.mxu0 0.0
  %97 = vmatpush1.msra.mxu0 %v36
  %98 = vmatprep.subr.mxu0 0.0
  %99 = vmatpush1.msra.mxu0 %v37
  %100 = vmatprep.subr.mxu0 0.0
  %101 = vmatpush1.msra.mxu0 %v38
  %102 = vmatprep.subr.mxu0 0.0
  %103 = vmatpush1.msra.mxu0 %v39
  %104 = vmatprep.subr.mxu0 0.0
  %105 = vmatpush1.msra.mxu0 0.0
  %106 = vmatprep.subr.mxu0 0.0
  %107 = vmatpush1.msra.mxu0 0.0
  %108 = vmatprep.subr.mxu0 0.0
  %109 = vmatpush1.msra.mxu0 0.0
  %110 = vmatprep.subr.mxu0 0.0
  %111 = vmatpush1.msra.mxu0 0.0
  %112 = vmatprep.subr.mxu0 0.0
  %113 = vmatpush1.msra.mxu0 0.0
  %114 = vmatprep.subr.mxu0 0.0
  %115 = vmatpush1.msra.mxu0 0.0
  %116 = vmatprep.subr.mxu0 0.0
  %117 = vmatpush1.msra.mxu0 0.0
  %118 = vmatprep.subr.mxu0 0.0
  %119 = vmatpush1.msra.mxu0 0.0
  %120 = vmatprep.subr.mxu0 0.0
  %121 = vmatpush1.msra.mxu0 0.0
  %122 = vmatprep.subr.mxu0 0.0
  %123 = vmatpush1.msra.mxu0 0.0
  %124 = vmatprep.subr.mxu0 0.0
  %125 = vmatpush1.msra.mxu0 0.0
  %126 = vmatprep.subr.mxu0 0.0
  %127 = vmatpush1.msra.mxu0 0.0
  %128 = vmatprep.subr.mxu0 0.0
  %129 = vmatpush1.msra.mxu0 0.0
  %130 = vmatprep.subr.mxu0 0.0
  %131 = vmatpush1.msra.mxu0 0.0
  %132 = vmatprep.subr.mxu0 0.0
  %133 = vmatpush1.msra.mxu0 0.0
  %134 = vmatprep.subr.mxu0 0.0
  %135 = vmatpush1.msra.mxu0 0.0
  %136 = vmatprep.subr.mxu0 0.0
  %137 = vmatpush1.msra.mxu0 0.0
  %138 = vmatprep.subr.mxu0 0.0
  %139 = vmatpush1.msra.mxu0 0.0
  %140 = vmatprep.subr.mxu0 0.0
  %141 = vmatpush1.msra.mxu0 0.0
  %142 = vmatprep.subr.mxu0 0.0
  %143 = vmatpush1.msra.mxu0 0.0
  %144 = vmatprep.subr.mxu0 0.0
  %145 = vmatpush1.msra.mxu0 0.0
  %146 = vmatprep.subr.mxu0 0.0
  %147 = vmatpush1.msra.mxu0 0.0
  %148 = vmatprep.subr.mxu0 0.0
  %149 = vmatpush1.msra.mxu0 0.0
  %150 = vmatprep.subr.mxu0 0.0
  %151 = vmatpush1.msra.mxu0 0.0
  %152 = vmatprep.subr.mxu0 0.0
  %153 = vmatpush1.msra.mxu0 0.0
  %154 = vmatprep.subr.mxu0 0.0
  %155 = vmatpush1.msra.mxu0 0.0
  %156 = vmatprep.subr.mxu0 0.0
  %157 = vmatpush1.msra.mxu0 0.0
  %158 = vmatprep.subr.mxu0 0.0
  %159 = vmatpush1.msra.mxu0 0.0
  %160 = vmatprep.mubr.f32.mxu0 0.0
  %161 = vmatmul.mubr.f32.gmra.mrb[0].mxu0 %v49
  %v162 = vpop.f32.mrb[0].mxu0
  %v163 = vadd.f32 %v45, %v162
  %v164 = vpop.f32.mrb[0].mxu0
  %165 = vmatprep.mubr.f32.mxu0 0.0
  %166 = vmatmul.mubr.f32.gmra.mrb[0].mxu0 %v52
  %v167 = vpop.f32.mrb[0].mxu0
  %v168 = vadd.f32 %v45, %v167
  %v169 = vpop.f32.mrb[0].mxu0
  %170 = vmatprep.mubr.f32.mxu0 0.0
  %171 = vmatmul.mubr.f32.gmra.mrb[0].mxu0 %v55
  %v172 = vpop.f32.mrb[0].mxu0
  %v173 = vadd.f32 %v45, %v172
  %v174 = vpop.f32.mrb[0].mxu0
  %175 = vmatprep.mubr.f32.mxu0 0.0
  %176 = vmatmul.mubr.f32.gmra.mrb[0].mxu0 %v58
  %v177 = vpop.f32.mrb[0].mxu0
  %v178 = vadd.f32 %v45, %v177
  %v179 = vpop.f32.mrb[0].mxu0
  %180 = vmatprep.mubr.f32.mxu0 0.0
  %181 = vmatmul.mubr.f32.gmra.mrb[0].mxu0 %v61
  %v182 = vpop.f32.mrb[0].mxu0
  %v183 = vadd.f32 %v45, %v182
  %v184 = vpop.f32.mrb[0].mxu0
  %185 = vmatprep.mubr.f32.mxu0 0.0
  %186 = vmatmul.mubr.f32.gmra.mrb[0].mxu0 %v64
  %v187 = vpop.f32.mrb[0].mxu0
  %v188 = vadd.f32 %v45, %v187
  %v189 = vpop.f32.mrb[0].mxu0
  %190 = vmatprep.mubr.f32.mxu0 0.0
  %191 = vmatmul.mubr.f32.gmra.mrb[0].mxu0 %v67
  %v192 = vpop.f32.mrb[0].mxu0
  %v193 = vadd.f32 %v45, %v192
  %v194 = vpop.f32.mrb[0].mxu0
  %195 = vmatprep.mubr.f32.mxu0 0.0
  %196 = vmatmul.mubr.f32.gmra.mrb[0].mxu0 %v70
  %v197 = vpop.f32.mrb[0].mxu0
  %v198 = vadd.f32 %v45, %v197
  %v199 = vpop.f32.mrb[0].mxu0
  %200 = vmatprep.mubr.f32.mxu0 0.0
  %201 = vmatmul.mubr.f32.gmra.mrb[0].mxu0 %v73
  %v202 = vpop.f32.mrb[0].mxu0
  %v203 = vadd.f32 %v45, %v202
  %v204 = vpop.f32.mrb[0].mxu0
  %205 = vmatprep.mubr.f32.mxu0 0.0
  %206 = vmatmul.mubr.f32.gmra.mrb[0].mxu0 %v76
  %v207 = vpop.f32.mrb[0].mxu0
  %v208 = vadd.f32 %v45, %v207
  %v209 = vpop.f32.mrb[0].mxu0
  %210 = vmatprep.mubr.f32.mxu0 0.0
  %211 = vmatmul.mubr.f32.gmra.mrb[0].mxu0 %v79
  %v212 = vpop.f32.mrb[0].mxu0
  %v213 = vadd.f32 %v45, %v212
  %v214 = vpop.f32.mrb[0].mxu0
  %215 = vmatprep.mubr.f32.mxu0 0.0
  %216 = vmatmul.mubr.f32.gmra.mrb[0].mxu0 %v82
  %v217 = vpop.f32.mrb[0].mxu0
  %v218 = vadd.f32 %v45, %v217
  %v219 = vpop.f32.mrb[0].mxu0
  %220 = vmatprep.mubr.f32.mxu0 0.0
  %221 = vmatmul.mubr.f32.gmra.mrb[0].mxu0 %v85
  %v222 = vpop.f32.mrb[0].mxu0
  %v223 = vadd.f32 %v45, %v222
  %v224 = vpop.f32.mrb[0].mxu0
  %225 = vmatprep.mubr.f32.mxu0 0.0
  %226 = vmatmul.mubr.f32.gmra.mrb[0].mxu0 %v88
  %v227 = vpop.f32.mrb[0].mxu0
  %v228 = vadd.f32 %v45, %v227
  %v229 = vpop.f32.mrb[0].mxu0
  %230 = vmatprep.mubr.f32.mxu0 0.0
  %231 = vmatmul.mubr.f32.gmra.mrb[0].mxu0 %v91
  %v232 = vpop.f32.mrb[0].mxu0
  %v233 = vadd.f32 %v45, %v232
  %v234 = vpop.f32.mrb[0].mxu0
  %235 = vmatprep.mubr.f32.mxu0 0.0
  %236 = vmatmul.mubr.f32.gmra.mrb[0].mxu0 %v94
  %v237 = vpop.f32.mrb[0].mxu0
  %v238 = vadd.f32 %v45, %v237
  %v239 = vpop.f32.mrb[0].mxu0
  %240 = vdwg.mxu0
  %v241 = vld [vmem:[%s3] sm:$0xff]
  %v242 = vld [vmem:[%s3 + $0x8] sm:$0xff]
  %v243 = vld [vmem:[%s3 + $0x10] sm:$0xff]
  %v244 = vld [vmem:[%s3 + $0x18] sm:$0xff]
  %245 = vmatprep.subr.mxu0 0.0
  %246 = vmatpush1.msra.mxu0 %v241
  %247 = vmatprep.subr.mxu0 0.0
  %248 = vmatpush1.msra.mxu0 %v242
  %249 = vmatprep.subr.mxu0 0.0
  %250 = vmatpush1.msra.mxu0 %v243
  %251 = vmatprep.subr.mxu0 0.0
  %252 = vmatpush1.msra.mxu0 %v244
  %253 = vmatprep.subr.mxu0 0.0
  %254 = vmatpush1.msra.mxu0 0.0
  %255 = vmatprep.subr.mxu0 0.0
  %256 = vmatpush1.msra.mxu0 0.0
  %257 = vmatprep.subr.mxu0 0.0
  %258 = vmatpush1.msra.mxu0 0.0
  %259 = vmatprep.subr.mxu0 0.0
  %260 = vmatpush1.msra.mxu0 0.0
  %261 = vmatprep.subr.mxu0 0.0
  %262 = vmatpush1.msra.mxu0 0.0
  %263 = vmatprep.subr.mxu0 0.0
  %264 = vmatpush1.msra.mxu0 0.0
  %265 = vmatprep.subr.mxu0 0.0
  %266 = vmatpush1.msra.mxu0 0.0
  %267 = vmatprep.subr.mxu0 0.0
  %268 = vmatpush1.msra.mxu0 0.0
  %269 = vmatprep.subr.mxu0 0.0
  %270 = vmatpush1.msra.mxu0 0.0
  %271 = vmatprep.subr.mxu0 0.0
  %272 = vmatpush1.msra.mxu0 0.0
  %273 = vmatprep.subr.mxu0 0.0
  %274 = vmatpush1.msra.mxu0 0.0
  %275 = vmatprep.subr.mxu0 0.0
  %276 = vmatpush1.msra.mxu0 0.0
  %277 = vmatprep.subr.mxu0 0.0
  %278 = vmatpush1.msra.mxu0 0.0
  %279 = vmatprep.subr.mxu0 0.0
  %280 = vmatpush1.msra.mxu0 0.0
  %281 = vmatprep.subr.mxu0 0.0
  %282 = vmatpush1.msra.mxu0 0.0
  %283 = vmatprep.subr.mxu0 0.0
  %284 = vmatpush1.msra.mxu0 0.0
  %285 = vmatprep.subr.mxu0 0.0
  %286 = vmatpush1.msra.mxu0 0.0
  %287 = vmatprep.subr.mxu0 0.0
  %288 = vmatpush1.msra.mxu0 0.0
  %289 = vmatprep.subr.mxu0 0.0
  %290 = vmatpush1.msra.mxu0 0.0
  %291 = vmatprep.subr.mxu0 0.0
  %292 = vmatpush1.msra.mxu0 0.0
  %293 = vmatprep.subr.mxu0 0.0
  %294 = vmatpush1.msra.mxu0 0.0
  %295 = vmatprep.subr.mxu0 0.0
  %296 = vmatpush1.msra.mxu0 0.0
  %297 = vmatprep.subr.mxu0 0.0
  %298 = vmatpush1.msra.mxu0 0.0
  %299 = vmatprep.subr.mxu0 0.0
  %300 = vmatpush1.msra.mxu0 0.0
  %301 = vmatprep.subr.mxu0 0.0
  %302 = vmatpush1.msra.mxu0 0.0
  %303 = vmatprep.subr.mxu0 0.0
  %304 = vmatpush1.msra.mxu0 0.0
  %305 = vmatprep.subr.mxu0 0.0
  %306 = vmatpush1.msra.mxu0 0.0
  %307 = vmatprep.subr.mxu0 0.0
  %308 = vmatpush1.msra.mxu0 0.0
  %309 = vmatprep.mubr.f32.mxu0 0.0
  %310 = vmatmul.mubr.f32.gmra.mrb[0].mxu0 %v49
  %v311 = vpop.f32.mrb[0].mxu0
  %v312 = vadd.f32 0.0, %v311
  %v313 = vpop.f32.mrb[0].mxu0
  %314 = vmatprep.mubr.f32.mxu0 0.0
  %315 = vmatmul.mubr.f32.gmra.mrb[0].mxu0 %v52
  %v316 = vpop.f32.mrb[0].mxu0
  %v317 = vadd.f32 0.0, %v316
  %v318 = vpop.f32.mrb[0].mxu0
  %319 = vmatprep.mubr.f32.mxu0 0.0
  %320 = vmatmul.mubr.f32.gmra.mrb[0].mxu0 %v55
  %v321 = vpop.f32.mrb[0].mxu0
  %v322 = vadd.f32 0.0, %v321
  %v323 = vpop.f32.mrb[0].mxu0
  %324 = vmatprep.mubr.f32.mxu0 0.0
  %325 = vmatmul.mubr.f32.gmra.mrb[0].mxu0 %v58
  %v326 = vpop.f32.mrb[0].mxu0
  %v327 = vadd.f32 0.0, %v326
  %v328 = vpop.f32.mrb[0].mxu0
  %329 = vmatprep.mubr.f32.mxu0 0.0
  %330 = vmatmul.mubr.f32.gmra.mrb[0].mxu0 %v61
  %v331 = vpop.f32.mrb[0].mxu0
  %v332 = vadd.f32 0.0, %v331
  %v333 = vpop.f32.mrb[0].mxu0
  %334 = vmatprep.mubr.f32.mxu0 0.0
  %335 = vmatmul.mubr.f32.gmra.mrb[0].mxu0 %v64
  %v336 = vpop.f32.mrb[0].mxu0
  %v337 = vadd.f32 0.0, %v336
  %v338 = vpop.f32.mrb[0].mxu0
  %339 = vmatprep.mubr.f32.mxu0 0.0
  %340 = vmatmul.mubr.f32.gmra.mrb[0].mxu0 %v67
  %v341 = vpop.f32.mrb[0].mxu0
  %v342 = vadd.f32 0.0, %v341
  %v343 = vpop.f32.mrb[0].mxu0
  %344 = vmatprep.mubr.f32.mxu0 0.0
  %345 = vmatmul.mubr.f32.gmra.mrb[0].mxu0 %v70
  %v346 = vpop.f32.mrb[0].mxu0
  %v347 = vadd.f32 0.0, %v346
  %v348 = vpop.f32.mrb[0].mxu0
  %349 = vmatprep.mubr.f32.mxu0 0.0
  %350 = vmatmul.mubr.f32.gmra.mrb[0].mxu0 %v73
  %v351 = vpop.f32.mrb[0].mxu0
  %v352 = vadd.f32 0.0, %v351
  %v353 = vpop.f32.mrb[0].mxu0
  %354 = vmatprep.mubr.f32.mxu0 0.0
  %355 = vmatmul.mubr.f32.gmra.mrb[0].mxu0 %v76
  %v356 = vpop.f32.mrb[0].mxu0
  %v357 = vadd.f32 0.0, %v356
  %v358 = vpop.f32.mrb[0].mxu0
  %359 = vmatprep.mubr.f32.mxu0 0.0
  %360 = vmatmul.mubr.f32.gmra.mrb[0].mxu0 %v79
  %v361 = vpop.f32.mrb[0].mxu0
  %v362 = vadd.f32 0.0, %v361
  %v363 = vpop.f32.mrb[0].mxu0
  %364 = vmatprep.mubr.f32.mxu0 0.0
  %365 = vmatmul.mubr.f32.gmra.mrb[0].mxu0 %v82
  %v366 = vpop.f32.mrb[0].mxu0
  %v367 = vadd.f32 0.0, %v366
  %v368 = vpop.f32.mrb[0].mxu0
  %369 = vmatprep.mubr.f32.mxu0 0.0
  %370 = vmatmul.mubr.f32.gmra.mrb[0].mxu0 %v85
  %v371 = vpop.f32.mrb[0].mxu0
  %v372 = vadd.f32 0.0, %v371
  %v373 = vpop.f32.mrb[0].mxu0
  %374 = vmatprep.mubr.f32.mxu0 0.0
  %375 = vmatmul.mubr.f32.gmra.mrb[0].mxu0 %v88
  %v376 = vpop.f32.mrb[0].mxu0
  %v377 = vadd.f32 0.0, %v376
  %v378 = vpop.f32.mrb[0].mxu0
  %379 = vmatprep.mubr.f32.mxu0 0.0
  %380 = vmatmul.mubr.f32.gmra.mrb[0].mxu0 %v91
  %v381 = vpop.f32.mrb[0].mxu0
  %v382 = vadd.f32 0.0, %v381
  %v383 = vpop.f32.mrb[0].mxu0
  %384 = vmatprep.mubr.f32.mxu0 0.0
  %385 = vmatmul.mubr.f32.gmra.mrb[0].mxu0 %v94
  %v386 = vpop.f32.mrb[0].mxu0
  %v387 = vadd.f32 0.0, %v386
  %v388 = vpop.f32.mrb[0].mxu0
  %389 = vdwg.mxu0
  %v390 = vld [vmem:[%s4] sm:$0xff]
  %vm391 = vcmask 64512
  %v393 = vsel %vm391, %v312, 0
  %v396 = vsel %vm391, %v317, 0
  %v399 = vsel %vm391, %v322, 0
  %v402 = vsel %vm391, %v327, 0
  %v405 = vsel %vm391, %v332, 0
  %v408 = vsel %vm391, %v337, 0
  %v411 = vsel %vm391, %v342, 0
  %v414 = vsel %vm391, %v347, 0
  %v417 = vsel %vm391, %v352, 0
  %v420 = vsel %vm391, %v357, 0
  %v423 = vsel %vm391, %v362, 0
  %v426 = vsel %vm391, %v367, 0
  %v429 = vsel %vm391, %v372, 0
  %v432 = vsel %vm391, %v377, 0
  %v435 = vsel %vm391, %v382, 0
  %v438 = vsel %vm391, %v387, 0
  %440 = vmatprep.subr.mxu0 0.0
  %441 = vmatpush1.msra.mxu0 %v390
  %442 = vmatprep.subr.mxu0 0.0
  %443 = vmatpush1.msra.mxu0 0.0
  %444 = vmatprep.subr.mxu0 0.0
  %445 = vmatpush1.msra.mxu0 0.0
  %446 = vmatprep.subr.mxu0 0.0
  %447 = vmatpush1.msra.mxu0 0.0
  %448 = vmatprep.subr.mxu0 0.0
  %449 = vmatpush1.msra.mxu0 0.0
  %450 = vmatprep.subr.mxu0 0.0
  %451 = vmatpush1.msra.mxu0 0.0
  %452 = vmatprep.subr.mxu0 0.0
  %453 = vmatpush1.msra.mxu0 0.0
  %454 = vmatprep.subr.mxu0 0.0
  %455 = vmatpush1.msra.mxu0 0.0
  %456 = vmatprep.subr.mxu0 0.0
  %457 = vmatpush1.msra.mxu0 0.0
  %458 = vmatprep.subr.mxu0 0.0
  %459 = vmatpush1.msra.mxu0 0.0
  %460 = vmatprep.subr.mxu0 0.0
  %461 = vmatpush1.msra.mxu0 0.0
  %462 = vmatprep.subr.mxu0 0.0
  %463 = vmatpush1.msra.mxu0 0.0
  %464 = vmatprep.subr.mxu0 0.0
  %465 = vmatpush1.msra.mxu0 0.0
  %466 = vmatprep.subr.mxu0 0.0
  %467 = vmatpush1.msra.mxu0 0.0
  %468 = vmatprep.subr.mxu0 0.0
  %469 = vmatpush1.msra.mxu0 0.0
  %470 = vmatprep.subr.mxu0 0.0
  %471 = vmatpush1.msra.mxu0 0.0
  %472 = vmatprep.subr.mxu0 0.0
  %473 = vmatpush1.msra.mxu0 0.0
  %474 = vmatprep.subr.mxu0 0.0
  %475 = vmatpush1.msra.mxu0 0.0
  %476 = vmatprep.subr.mxu0 0.0
  %477 = vmatpush1.msra.mxu0 0.0
  %478 = vmatprep.subr.mxu0 0.0
  %479 = vmatpush1.msra.mxu0 0.0
  %480 = vmatprep.subr.mxu0 0.0
  %481 = vmatpush1.msra.mxu0 0.0
  %482 = vmatprep.subr.mxu0 0.0
  %483 = vmatpush1.msra.mxu0 0.0
  %484 = vmatprep.subr.mxu0 0.0
  %485 = vmatpush1.msra.mxu0 0.0
  %486 = vmatprep.subr.mxu0 0.0
  %487 = vmatpush1.msra.mxu0 0.0
  %488 = vmatprep.subr.mxu0 0.0
  %489 = vmatpush1.msra.mxu0 0.0
  %490 = vmatprep.subr.mxu0 0.0
  %491 = vmatpush1.msra.mxu0 0.0
  %492 = vmatprep.subr.mxu0 0.0
  %493 = vmatpush1.msra.mxu0 0.0
  %494 = vmatprep.subr.mxu0 0.0
  %495 = vmatpush1.msra.mxu0 0.0
  %496 = vmatprep.subr.mxu0 0.0
  %497 = vmatpush1.msra.mxu0 0.0
  %498 = vmatprep.subr.mxu0 0.0
  %499 = vmatpush1.msra.mxu0 0.0
  %500 = vmatprep.subr.mxu0 0.0
  %501 = vmatpush1.msra.mxu0 0.0
  %502 = vmatprep.subr.mxu0 0.0
  %503 = vmatpush1.msra.mxu0 0.0
  %504 = vmatprep.mubr.f32.mxu0 0.0
  %505 = vmatmul.mubr.f32.gmra.mrb[0].mxu0 %v393
  %v506 = vpop.f32.mrb[0].mxu0
  %v507 = vadd.f32 0.0, %v506
  %v508 = vpop.f32.mrb[0].mxu0
  %509 = vmatprep.mubr.f32.mxu0 0.0
  %510 = vmatmul.mubr.f32.gmra.mrb[0].mxu0 %v396
  %v511 = vpop.f32.mrb[0].mxu0
  %v512 = vadd.f32 0.0, %v511
  %v513 = vpop.f32.mrb[0].mxu0
  %514 = vmatprep.mubr.f32.mxu0 0.0
  %515 = vmatmul.mubr.f32.gmra.mrb[0].mxu0 %v399
  %v516 = vpop.f32.mrb[0].mxu0
  %v517 = vadd.f32 0.0, %v516
  %v518 = vpop.f32.mrb[0].mxu0
  %519 = vmatprep.mubr.f32.mxu0 0.0
  %520 = vmatmul.mubr.f32.gmra.mrb[0].mxu0 %v402
  %v521 = vpop.f32.mrb[0].mxu0
  %v522 = vadd.f32 0.0, %v521
  %v523 = vpop.f32.mrb[0].mxu0
  %524 = vmatprep.mubr.f32.mxu0 0.0
  %525 = vmatmul.mubr.f32.gmra.mrb[0].mxu0 %v405
  %v526 = vpop.f32.mrb[0].mxu0
  %v527 = vadd.f32 0.0, %v526
  %v528 = vpop.f32.mrb[0].mxu0
  %529 = vmatprep.mubr.f32.mxu0 0.0
  %530 = vmatmul.mubr.f32.gmra.mrb[0].mxu0 %v408
  %v531 = vpop.f32.mrb[0].mxu0
  %v532 = vadd.f32 0.0, %v531
  %v533 = vpop.f32.mrb[0].mxu0
  %534 = vmatprep.mubr.f32.mxu0 0.0
  %535 = vmatmul.mubr.f32.gmra.mrb[0].mxu0 %v411
  %v536 = vpop.f32.mrb[0].mxu0
  %v537 = vadd.f32 0.0, %v536
  %v538 = vpop.f32.mrb[0].mxu0
  %539 = vmatprep.mubr.f32.mxu0 0.0
  %540 = vmatmul.mubr.f32.gmra.mrb[0].mxu0 %v414
  %v541 = vpop.f32.mrb[0].mxu0
  %v542 = vadd.f32 0.0, %v541
  %v543 = vpop.f32.mrb[0].mxu0
  %544 = vmatprep.mubr.f32.mxu0 0.0
  %545 = vmatmul.mubr.f32.gmra.mrb[0].mxu0 %v417
  %v546 = vpop.f32.mrb[0].mxu0
  %v547 = vadd.f32 0.0, %v546
  %v548 = vpop.f32.mrb[0].mxu0
  %549 = vmatprep.mubr.f32.mxu0 0.0
  %550 = vmatmul.mubr.f32.gmra.mrb[0].mxu0 %v420
  %v551 = vpop.f32.mrb[0].mxu0
  %v552 = vadd.f32 0.0, %v551
  %v553 = vpop.f32.mrb[0].mxu0
  %554 = vmatprep.mubr.f32.mxu0 0.0
  %555 = vmatmul.mubr.f32.gmra.mrb[0].mxu0 %v423
  %v556 = vpop.f32.mrb[0].mxu0
  %v557 = vadd.f32 0.0, %v556
  %v558 = vpop.f32.mrb[0].mxu0
  %559 = vmatprep.mubr.f32.mxu0 0.0
  %560 = vmatmul.mubr.f32.gmra.mrb[0].mxu0 %v426
  %v561 = vpop.f32.mrb[0].mxu0
  %v562 = vadd.f32 0.0, %v561
  %v563 = vpop.f32.mrb[0].mxu0
  %564 = vmatprep.mubr.f32.mxu0 0.0
  %565 = vmatmul.mubr.f32.gmra.mrb[0].mxu0 %v429
  %v566 = vpop.f32.mrb[0].mxu0
  %v567 = vadd.f32 0.0, %v566
  %v568 = vpop.f32.mrb[0].mxu0
  %569 = vmatprep.mubr.f32.mxu0 0.0
  %570 = vmatmul.mubr.f32.gmra.mrb[0].mxu0 %v432
  %v571 = vpop.f32.mrb[0].mxu0
  %v572 = vadd.f32 0.0, %v571
  %v573 = vpop.f32.mrb[0].mxu0
  %574 = vmatprep.mubr.f32.mxu0 0.0
  %575 = vmatmul.mubr.f32.gmra.mrb[0].mxu0 %v435
  %v576 = vpop.f32.mrb[0].mxu0
  %v577 = vadd.f32 0.0, %v576
  %v578 = vpop.f32.mrb[0].mxu0
  %579 = vmatprep.mubr.f32.mxu0 0.0
  %580 = vmatmul.mubr.f32.gmra.mrb[0].mxu0 %v438
  %v581 = vpop.f32.mrb[0].mxu0
  %v582 = vadd.f32 0.0, %v581
  %v583 = vpop.f32.mrb[0].mxu0
  %584 = vdwg.mxu0
  %v585 = vadd.f32 %v163, %v507
  %v586 = vadd.f32 %v168, %v512
  %v587 = vadd.f32 %v173, %v517
  %v588 = vadd.f32 %v178, %v522
  %v589 = vadd.f32 %v183, %v527
  %v590 = vadd.f32 %v188, %v532
  %v591 = vadd.f32 %v193, %v537
  %v592 = vadd.f32 %v198, %v542
  %v593 = vadd.f32 %v203, %v547
  %v594 = vadd.f32 %v208, %v552
  %v595 = vadd.f32 %v213, %v557
  %v596 = vadd.f32 %v218, %v562
  %v597 = vadd.f32 %v223, %v567
  %v598 = vadd.f32 %v228, %v572
  %v599 = vadd.f32 %v233, %v577
  %v600 = vadd.f32 %v238, %v582
  %vm601 = vcmask 785408
  %602 = vst.msk [vmem:[%s5] sm:$0xff] %vm601, %v585
  %603 = vst.msk [vmem:[%s5 + $0x8] sm:$0xff] %vm601, %v586
  %604 = vst.msk [vmem:[%s5 + $0x10] sm:$0xff] %vm601, %v587
  %605 = vst.msk [vmem:[%s5 + $0x18] sm:$0xff] %vm601, %v588
  %606 = vst.msk [vmem:[%s5 + $0x20] sm:$0xff] %vm601, %v589
  %607 = vst.msk [vmem:[%s5 + $0x28] sm:$0xff] %vm601, %v590
  %608 = vst.msk [vmem:[%s5 + $0x30] sm:$0xff] %vm601, %v591
  %609 = vst.msk [vmem:[%s5 + $0x38] sm:$0xff] %vm601, %v592
  %610 = vst.msk [vmem:[%s5 + $0x40] sm:$0xff] %vm601, %v593
  %611 = vst.msk [vmem:[%s5 + $0x48] sm:$0xff] %vm601, %v594
  %612 = vst.msk [vmem:[%s5 + $0x50] sm:$0xff] %vm601, %v595
  %613 = vst.msk [vmem:[%s5 + $0x58] sm:$0xff] %vm601, %v596
  %614 = vst.msk [vmem:[%s5 + $0x60] sm:$0xff] %vm601, %v597
  %615 = vst.msk [vmem:[%s5 + $0x68] sm:$0xff] %vm601, %v598
  %616 = vst.msk [vmem:[%s5 + $0x70] sm:$0xff] %vm601, %v599
  %617 = vst.msk [vmem:[%s5 + $0x78] sm:$0xff] %vm601, %v600
  // Predicated region
  $region22: #{tpu_custom_call.1} parent=0 // pred_check
    _
  $region23: #{tpu_custom_call.1} parent=0 // pred_check_branch
    %619 = sbr.rel (0) target = $region25
  $region24: #{tpu_custom_call.1} parent=0 // pred_region
    _
  $region25: #{tpu_custom_call.1} parent=0 // pred_fallthru
    _
  // Predicated region
  $region26: #{tpu_custom_call.1} parent=0 // pred_check
    _
  $region27: #{tpu_custom_call.1} parent=0 // pred_check_branch
    %621 = sbr.rel (0) target = $region29
  $region28: #{tpu_custom_call.1} parent=0 // pred_region
    _
  $region29: #{tpu_custom_call.1} parent=0 // pred_fallthru
    _

</llo_original>
